<compile_context>
chip_gen: v5e
topology: v5e:2x2
jax: 0.10.0
libtpu: 0.0.40
codegen_flags: <defaults>
</compile_context>

<pallas_src>
import jax
import jax.numpy as jnp
from jax.experimental import pallas as pl
from jax.experimental.pallas import tpu as pltpu

_LANES = 128
# ~2 MiB per tile -> 4 double-buffers ~ 8 MiB, safe on v5e/v6e/v7x scoped VMEM.
_TARGET_TILE_BYTES = 2 * 1024 * 1024


def _ceil_kernel(x_ref, o_ref):
    # torch.ceil semantics == jnp.ceil (elementwise, dtype-preserving)
    o_ref[...] = jnp.ceil(x_ref[...])


def _sublane_pack(dtype) -> int:
    # rows per sublane group: 8 for 4-byte, 16 for 2-byte, 32 for 1-byte dtypes
    itemsize = jnp.dtype(dtype).itemsize
    return max(8, 32 // max(itemsize, 1))


def pg_ceil(x: jax.Array, *, use_xla_below: int = 65536) -> jax.Array:
    """PGCeil forward: elementwise ceil, matching torch.ceil."""
    orig_shape = x.shape
    orig_dtype = x.dtype
    n = x.size

    # Small-input fast path: launch/reshape overhead dominates, plain XLA wins.
    if n == 0 or n < use_xla_below:
        return jnp.ceil(x)

    pack = _sublane_pack(orig_dtype)
    itemsize = jnp.dtype(orig_dtype).itemsize

    x_flat = jnp.reshape(x, (-1,))
    if n % _LANES != 0:
        # Only in the awkward case do we pay a pad + tail slice; since we are
        # copying anyway, pad straight to the sublane-aligned granule.
        granule = pack * _LANES
        padded = ((n + granule - 1) // granule) * granule
        x_flat = jnp.pad(x_flat, (0, padded - n))
    else:
        padded = n

    rows = padded // _LANES
    x2d = jnp.reshape(x_flat, (rows, _LANES))

    # ~2 MiB lane-dense tiles, dtype-aware sublane-aligned row count.
    tr = max(pack, (_TARGET_TILE_BYTES // (_LANES * itemsize)) // pack * pack)
    if tr >= rows:
        # Block equal to the full array dims is always legal (even if rows is
        # not a multiple of the sublane pack).
        tr = rows
    grid = (pl.cdiv(rows, tr),)  # ragged last block handled by Pallas

    out2d = pl.pallas_call(
        _ceil_kernel,
        out_shape=jax.ShapeDtypeStruct((rows, _LANES), orig_dtype),
        grid_spec=pltpu.PrefetchScalarGridSpec(
            num_scalar_prefetch=0,
            grid=grid,
            in_specs=[pl.BlockSpec((tr, _LANES), lambda i: (i, 0))],
            out_specs=pl.BlockSpec((tr, _LANES), lambda i: (i, 0)),
        ),
        compiler_params=pltpu.CompilerParams(
            dimension_semantics=("parallel",),  # shards grid across v7x's 2 TCs
        ),
    )(x2d)

    out_flat = jnp.reshape(out2d, (-1,))
    if padded != n:
        out_flat = out_flat[:n]
    return jnp.reshape(out_flat, orig_shape)


if __name__ == "__main__":
    key = jax.random.PRNGKey(0)
    # small NCHW input consistent with the module's elementwise forward
    x = jax.random.normal(key, (2, 4, 16, 16), dtype=jnp.float32) * 3.0

    # use_xla_below=0 forces the Pallas path even for this small test tensor
    y = jax.block_until_ready(pg_ceil(x, use_xla_below=0))
    assert y.shape == x.shape and y.dtype == x.dtype
    assert bool(jnp.all(y == jnp.ceil(x)))

    # second small case with n_elems not a multiple of 128: exercises the
    # pad + tail-slice path
    x2 = jax.random.normal(jax.random.PRNGKey(0), (3, 5, 7, 11), dtype=jnp.float32) * 3.0
    y2 = jax.block_until_ready(pg_ceil(x2, use_xla_below=0))
    assert y2.shape == x2.shape and y2.dtype == x2.dtype
    assert bool(jnp.all(y2 == jnp.ceil(x2)))

    print("KERNEL_OK")
</pallas_src>

<mosaic_0001>
module attributes {stable_mosaic.version = 11 : i64} {
  func.func @_ceil_kernel(%arg0: i32, %arg1: memref<16x128xf32, #tpu.memory_space<vmem>>, %arg2: memref<16x128xf32, #tpu.memory_space<vmem>>) attributes {dimension_semantics = [#tpu.dimension_semantics<parallel>], iteration_bounds = array<i64: 1>, scalar_prefetch = 0 : i64, scratch_operands = 0 : i64, tpu.core_type = #tpu.core_type<tc>, window_params = [{transform_indices = @transform_0, window_bounds = array<i64: 16, 128>}, {transform_indices = @transform_1, window_bounds = array<i64: 16, 128>}]} {
    %c0 = arith.constant 0 : index
    %c0_0 = arith.constant 0 : index
    %0 = vector.load %arg1[%c0, %c0_0] : memref<16x128xf32, #tpu.memory_space<vmem>>, vector<16x128xf32>
    %1 = math.ceil %0 : vector<16x128xf32>
    %c0_1 = arith.constant 0 : index
    %c0_2 = arith.constant 0 : index
    %2 = vector.load %arg2[%c0_1, %c0_2] : memref<16x128xf32, #tpu.memory_space<vmem>>, vector<16x128xf32>
    tpu.vector_store %arg2[%c0_1, %c0_2], %1 {strides = array<i32>} : memref<16x128xf32, #tpu.memory_space<vmem>>, vector<16x128xf32>,
    return
  }
  func.func @transform_0(%arg0: i32) -> (i32, i32) {
    %c0_i32 = arith.constant 0 : i32
    %c0_i32_0 = arith.constant 0 : i32
    return %arg0, %c0_i32 : i32, i32
  }
  func.func @transform_1(%arg0: i32) -> (i32, i32) {
    %c0_i32 = arith.constant 0 : i32
    %c0_i32_0 = arith.constant 0 : i32
    return %arg0, %c0_i32 : i32, i32
  }
}

</mosaic_0001>

<llo_original>
// kernel: tpu_custom_call.1
$region0: #{tpu_custom_call.1}
  #allocation0 [shape = 'u32[]', space=smem, size = 0x4, offset = 0x4, fixed_abs, tag = 'smem constant byte address 0x4 - core index']
  #allocation1 [shape = 'u32[72,128]{1,0:T(1,128)}', space=vmem, size = 0x9000, scoped, tag = 'internal scratch']
  %s0 = inlined_call_operand.hbm [shape: f32[16,128], index: 0, kind: input, shape index: {}]
  %s1 = inlined_call_operand.hbm [shape: f32[16,128], index: 1, kind: output, shape index: {}]
  %s2 = sld [smem:[#allocation0]]
  $region18: #{tpu_custom_call.1} parent=0
    _
  %s4 = ssub.s32 1, %s2
  %s5 = scalar_select 0, %s4, %s2
  $region1: #{tpu_custom_call.1} parent=0
    #allocation2 [shape = 'u8[8192]{0}', space=vmem, size = 0x2000, scoped, tag = 'input window, operand 0, single buffered']
    #allocation3 [shape = 's32[1]{0}', space=sflag, size = 0x4, scoped, tag = 'scoped memory for tpu_custom_call.1']
    #allocation4 [shape = 's32[1]{0}', space=sflag, size = 0x4, scoped, tag = 'scoped memory for tpu_custom_call.1']
    #allocation5 [shape = 'u8[8192]{0}', space=vmem, size = 0x2000, scoped, tag = 'output window, operand 0, single buffered']
    %6 = vsyncpa [#allocation3], 0
    %7 = vsyncpa [#allocation4], 0
    // Predicated region
    $region2: #{tpu_custom_call.1} parent=1 // pred_check
      _
    $region3: #{tpu_custom_call.1} parent=1 // pred_check_branch
      %9 = sbr.rel (0) target = $region5
    $region4: #{tpu_custom_call.1} parent=1 // pred_region
      %11 = vsyncadd [#allocation3], 0
      %s12 = sshll.u32 %s0, 4
      %s13 = int_to_ptr.hbm [resolvable:$true] %s12
      %s14 = sshll.u32 [#allocation2], 4
      %s15 = int_to_ptr.vmem [resolvable:$true] %s14
      %20 = dma.hbm_to_vmem [thread:$0]  %s13, 256, %s15, [#allocation3], 128, 128, 8
    $region5: #{tpu_custom_call.1} parent=1 // pred_fallthru
      _
    // Predicated region
    $region6: #{tpu_custom_call.1} parent=1 // pred_check
      _
    $region7: #{tpu_custom_call.1} parent=1 // pred_check_branch
      %22 = sbr.rel (0) target = $region9
    $region8: #{tpu_custom_call.1} parent=1 // pred_region
      %24 = dma.done [#allocation3], 256
    $region9: #{tpu_custom_call.1} parent=1 // pred_fallthru
      _
    %v25 = vld [vmem:[#allocation2] sm:$0xff]
    %v26 = vld [vmem:[#allocation2 + $0x8] sm:$0xff]
    %v27 = vceil.f32 %v25
    %v28 = vceil.f32 %v26
    %29 = vst [vmem:[#allocation5] sm:$0xff] %v27
    %30 = vst [vmem:[#allocation5 + $0x8] sm:$0xff] %v28
    // Predicated region
    $region10: #{tpu_custom_call.1} parent=1 // pred_check
      _
    $region11: #{tpu_custom_call.1} parent=1 // pred_check_branch
      %32 = sbr.rel (0) target = $region13
    $region12: #{tpu_custom_call.1} parent=1 // pred_region
      %34 = vsyncadd [#allocation4], 0
      %s35 = sshll.u32 [#allocation5], 4
      %s36 = int_to_ptr.vmem [resolvable:$true] %s35
      %s37 = sshll.u32 %s1, 4
      %s38 = int_to_ptr.hbm [resolvable:$true] %s37
      %43 = dma.vmem_to_hbm [thread:$0]  %s36, 256, %s38, [#allocation4], 128, 128, 8
    $region13: #{tpu_custom_call.1} parent=1 // pred_fallthru
      _
    // Predicated region
    $region14: #{tpu_custom_call.1} parent=1 // pred_check
      _
    $region15: #{tpu_custom_call.1} parent=1 // pred_check_branch
      %45 = sbr.rel (0) target = $region17
    $region16: #{tpu_custom_call.1} parent=1 // pred_region
      %47 = dma.done [#allocation4], 256
    $region17: #{tpu_custom_call.1} parent=1 // pred_fallthru
      _
    %48 = vsyncpa [#allocation3], 1
    %49 = vsyncpa [#allocation4], 1

</llo_original>
